<compile_context>
chip_gen: v5e
topology: v5e:2x2
jax: 0.10.0
libtpu: 0.0.40
codegen_flags: <defaults>
</compile_context>

<pallas_src>
import jax
import jax.numpy as jnp
from jax.experimental import pallas as pl
from jax.experimental.pallas import tpu as pltpu

MEAN = 0.0
STD = 0.1

LANE = 1024          # lane-dense last dim, multiple of 128
MAX_TILE_ROWS = 256  # 256 x 1024 f32 = 1 MiB per block


def _noise_kernel_tpu(seed_ref, img_ref, out_ref):
    """TPU path: draw N(0,1) on-chip, scale/shift, add, clamp (fully fused)."""
    # Mix the tile index into the seed so every grid step draws fresh noise.
    pltpu.prng_seed(seed_ref[0], pl.program_id(0))
    noise = pltpu.stateful_normal(img_ref.shape, jnp.float32)
    noisy = img_ref[...] + noise * jnp.float32(STD)
    if MEAN != 0.0:  # trace-time constant; folded away when mean == 0
        noisy = noisy + jnp.float32(MEAN)
    out_ref[...] = jnp.clip(noisy, 0.0, 255.0)


def _noise_kernel_fallback(img_ref, noise_ref, out_ref):
    """Fallback path (CPU / interpret): standard-normal noise passed in."""
    noisy = img_ref[...] + noise_ref[...] * jnp.float32(STD)
    if MEAN != 0.0:
        noisy = noisy + jnp.float32(MEAN)
    out_ref[...] = jnp.clip(noisy, 0.0, 255.0)


def gaussian_noise_attack(image, seed=0):
    """image: (N, C, H, W) float32 -> (N, C, H, W) float32.

    Equivalent to: clamp(image + randn_like(image) * STD + MEAN, 0, 255).
    """
    orig_shape = image.shape
    image = image.astype(jnp.float32)
    total = int(image.size)

    # Lane-dense layout: pad the flat element count to whole (tile_rows, LANE)
    # tiles so block_shape always satisfies the (8, 128) / full-dim rule.
    rows = pl.cdiv(total, LANE)
    tile_rows = min(rows, MAX_TILE_ROWS)
    rows_padded = pl.cdiv(rows, tile_rows) * tile_rows
    padded_total = rows_padded * LANE

    flat = jnp.pad(image.reshape(-1), (0, padded_total - total))
    flat = flat.reshape(rows_padded, LANE)

    grid = (rows_padded // tile_rows,)
    block = (tile_rows, LANE)
    img_spec = pl.BlockSpec(block, lambda i: (i, 0))
    out_spec = pl.BlockSpec(block, lambda i: (i, 0))
    out_shape = jax.ShapeDtypeStruct(flat.shape, jnp.float32)

    on_tpu = jax.default_backend() == "tpu" and hasattr(pltpu, "stateful_normal")

    if on_tpu:
        nbytes = padded_total * 4
        out = pl.pallas_call(
            _noise_kernel_tpu,
            out_shape=out_shape,
            grid=grid,
            in_specs=[
                pl.BlockSpec(memory_space=pltpu.MemorySpace.SMEM),  # seed scalar
                img_spec,
            ],
            out_specs=out_spec,
            compiler_params=pltpu.CompilerParams(
                dimension_semantics=("parallel",),
            ),
            cost_estimate=pl.CostEstimate(
                flops=3 * padded_total,
                transcendentals=2 * padded_total,  # per-element normal draw
                bytes_accessed=2 * nbytes,
            ),
        )(jnp.asarray([seed], dtype=jnp.int32), flat)
    else:
        # TODO(synk): pltpu.prng_seed / pltpu.stateful_normal have no CPU /
        # interpret lowering, so off-TPU the standard-normal draw is done here
        # (outside the kernel); the kernel still fuses scale+add+clamp.
        noise = jax.random.normal(jax.random.PRNGKey(seed), flat.shape,
                                  dtype=jnp.float32)
        out = pl.pallas_call(
            _noise_kernel_fallback,
            out_shape=out_shape,
            grid=grid,
            in_specs=[img_spec, pl.BlockSpec(block, lambda i: (i, 0))],
            out_specs=out_spec,
        )(flat, noise)

    return out.reshape(-1)[:total].reshape(orig_shape)


if __name__ == "__main__":
    key = jax.random.PRNGKey(0)
    # Small NCHW image, values in [0, 255] like a typical uint8 image cast to float.
    x = jax.random.uniform(key, (2, 4, 16, 16), dtype=jnp.float32,
                           minval=0.0, maxval=255.0)

    y = gaussian_noise_attack(x, seed=0)
    y = jax.block_until_ready(y)

    # Sanity checks: shape/dtype preserved, values clamped, noise is small (std=0.1).
    assert y.shape == x.shape and y.dtype == x.dtype
    assert float(jnp.min(y)) >= 0.0 and float(jnp.max(y)) <= 255.0
    diff = y - x
    # Where no clamping happened, |y - x| should be a small Gaussian perturbation.
    assert float(jnp.max(jnp.abs(diff))) < 2.0   # ~20 sigma bound, extremely safe
    assert float(jnp.std(diff)) > 0.01           # noise was actually applied

    print("KERNEL_OK")
</pallas_src>

<mosaic_0001>
module attributes {stable_mosaic.version = 11 : i64} {
  func.func @_noise_kernel_fallback(%arg0: i32, %arg1: memref<2x1024xf32, #tpu.memory_space<vmem>>, %arg2: memref<2x1024xf32, #tpu.memory_space<vmem>>, %arg3: memref<2x1024xf32, #tpu.memory_space<vmem>>) attributes {dimension_semantics = [#tpu.dimension_semantics<arbitrary>], iteration_bounds = array<i64: 1>, scalar_prefetch = 0 : i64, scratch_operands = 0 : i64, tpu.core_type = #tpu.core_type<tc>, window_params = [{transform_indices = @transform_0, window_bounds = array<i64: 2, 1024>}, {transform_indices = @transform_1, window_bounds = array<i64: 2, 1024>}, {transform_indices = @transform_2, window_bounds = array<i64: 2, 1024>}]} {
    %c0 = arith.constant 0 : index
    %c0_0 = arith.constant 0 : index
    %0 = vector.load %arg1[%c0, %c0_0] : memref<2x1024xf32, #tpu.memory_space<vmem>>, vector<2x1024xf32>
    %c0_1 = arith.constant 0 : index
    %c0_2 = arith.constant 0 : index
    %1 = vector.load %arg2[%c0_1, %c0_2] : memref<2x1024xf32, #tpu.memory_space<vmem>>, vector<2x1024xf32>
    %cst = arith.constant 1.000000e-01 : f32
    %2 = vector.broadcast %cst : f32 to vector<2x1024xf32>
    %3 = arith.mulf %1, %2 : vector<2x1024xf32>
    %4 = arith.addf %0, %3 : vector<2x1024xf32>
    %cst_3 = arith.constant 0.000000e+00 : f32
    %cst_4 = arith.constant 2.550000e+02 : f32
    %5 = vector.broadcast %cst_3 : f32 to vector<2x1024xf32>
    %6 = arith.maximumf %5, %4 : vector<2x1024xf32>
    %7 = vector.broadcast %cst_4 : f32 to vector<2x1024xf32>
    %8 = arith.minimumf %7, %6 : vector<2x1024xf32>
    %c0_5 = arith.constant 0 : index
    %c0_6 = arith.constant 0 : index
    %9 = vector.load %arg3[%c0_5, %c0_6] : memref<2x1024xf32, #tpu.memory_space<vmem>>, vector<2x1024xf32>
    tpu.vector_store %arg3[%c0_5, %c0_6], %8 {strides = array<i32>} : memref<2x1024xf32, #tpu.memory_space<vmem>>, vector<2x1024xf32>,
    return
  }
  func.func @transform_0(%arg0: i32) -> (i32, i32) {
    %c0_i32 = arith.constant 0 : i32
    %c0_i32_0 = arith.constant 0 : i32
    return %arg0, %c0_i32 : i32, i32
  }
  func.func @transform_1(%arg0: i32) -> (i32, i32) {
    %c0_i32 = arith.constant 0 : i32
    %c0_i32_0 = arith.constant 0 : i32
    return %arg0, %c0_i32 : i32, i32
  }
  func.func @transform_2(%arg0: i32) -> (i32, i32) {
    %c0_i32 = arith.constant 0 : i32
    %c0_i32_0 = arith.constant 0 : i32
    return %arg0, %c0_i32 : i32, i32
  }
}

</mosaic_0001>

<llo_original>
// kernel: tpu_custom_call.1
$region0: #{tpu_custom_call.1}
  #allocation0 [shape = 'u32[]', space=smem, size = 0x4, offset = 0x4, fixed_abs, tag = 'smem constant byte address 0x4 - core index']
  #allocation1 [shape = 'u32[72,128]{1,0:T(1,128)}', space=vmem, size = 0x9000, scoped, tag = 'internal scratch']
  %s0 = inlined_call_operand.hbm [shape: f32[2,1024], index: 0, kind: input, shape index: {}]
  %s1 = inlined_call_operand.hbm [shape: f32[2,1024], index: 1, kind: input, shape index: {}]
  %s2 = inlined_call_operand.hbm [shape: f32[2,1024], index: 2, kind: output, shape index: {}]
  %s3 = sld [smem:[#allocation0]]
  $region26: #{tpu_custom_call.1} parent=0
    _
  %s5 = ssub.s32 1, %s3
  %s6 = scalar_select 0, %s5, %s3
  $region1: #{tpu_custom_call.1} parent=0
    #allocation2 [shape = 'u8[8192]{0}', space=vmem, size = 0x2000, scoped, tag = 'input window, operand 0, single buffered']
    #allocation3 [shape = 's32[1]{0}', space=sflag, size = 0x4, scoped, tag = 'scoped memory for tpu_custom_call.1']
    #allocation4 [shape = 's32[1]{0}', space=sflag, size = 0x4, scoped, tag = 'scoped memory for tpu_custom_call.1']
    #allocation5 [shape = 'u8[8192]{0}', space=vmem, size = 0x2000, scoped, tag = 'input window, operand 1, single buffered']
    #allocation6 [shape = 's32[1]{0}', space=sflag, size = 0x4, scoped, tag = 'scoped memory for tpu_custom_call.1']
    #allocation7 [shape = 'u8[8192]{0}', space=vmem, size = 0x2000, scoped, tag = 'output window, operand 0, single buffered']
    %7 = vsyncpa [#allocation3], 0
    %8 = vsyncpa [#allocation6], 0
    %9 = vsyncpa [#allocation4], 0
    // Predicated region
    $region2: #{tpu_custom_call.1} parent=1 // pred_check
      _
    $region3: #{tpu_custom_call.1} parent=1 // pred_check_branch
      %11 = sbr.rel (0) target = $region5
    $region4: #{tpu_custom_call.1} parent=1 // pred_region
      %13 = vsyncadd [#allocation3], 0
      %s15 = sshll.u32 %s0, 4
      %s16 = int_to_ptr.hbm [resolvable:$true] %s15
      %s17 = sshll.u32 [#allocation2], 4
      %s18 = int_to_ptr.vmem [resolvable:$true] %s17
      %20 = dma.hbm_to_vmem [thread:$0]  %s16, 256, %s18, [#allocation3]
    $region5: #{tpu_custom_call.1} parent=1 // pred_fallthru
      _
    // Predicated region
    $region6: #{tpu_custom_call.1} parent=1 // pred_check
      _
    $region7: #{tpu_custom_call.1} parent=1 // pred_check_branch
      %22 = sbr.rel (0) target = $region9
    $region8: #{tpu_custom_call.1} parent=1 // pred_region
      %24 = vsyncadd [#allocation6], 0
      %s26 = sshll.u32 %s1, 4
      %s27 = int_to_ptr.hbm [resolvable:$true] %s26
      %s28 = sshll.u32 [#allocation5], 4
      %s29 = int_to_ptr.vmem [resolvable:$true] %s28
      %31 = dma.hbm_to_vmem [thread:$0]  %s27, 256, %s29, [#allocation6]
    $region9: #{tpu_custom_call.1} parent=1 // pred_fallthru
      _
    // Predicated region
    $region10: #{tpu_custom_call.1} parent=1 // pred_check
      _
    $region11: #{tpu_custom_call.1} parent=1 // pred_check_branch
      %33 = sbr.rel (0) target = $region13
    $region12: #{tpu_custom_call.1} parent=1 // pred_region
      %35 = dma.done [#allocation3], 256
    $region13: #{tpu_custom_call.1} parent=1 // pred_fallthru
      _
    // Predicated region
    $region14: #{tpu_custom_call.1} parent=1 // pred_check
      _
    $region15: #{tpu_custom_call.1} parent=1 // pred_check_branch
      %37 = sbr.rel (0) target = $region17
    $region16: #{tpu_custom_call.1} parent=1 // pred_region
      %39 = dma.done [#allocation6], 256
    $region17: #{tpu_custom_call.1} parent=1 // pred_fallthru
      _
    %v40 = vld [vmem:[#allocation2] sm:$0xff]
    %v41 = vld [vmem:[#allocation2 + $0x8] sm:$0xff]
    %v42 = vld [vmem:[#allocation5] sm:$0xff]
    %v43 = vld [vmem:[#allocation5 + $0x8] sm:$0xff]
    %v44 = vmul.f32 %v42, 0.1
    %v45 = vmul.f32 %v43, 0.1
    %v46 = vadd.f32 %v40, %v44
    %v47 = vadd.f32 %v41, %v45
    %v48 = vmax.f32 %v46, 0.0
    %v49 = vmax.f32 %v47, 0.0
    %v50 = vmin.f32 %v48, 255.0
    %v51 = vmin.f32 %v49, 255.0
    %52 = vst [vmem:[#allocation7] sm:$0xff] %v50
    %53 = vst [vmem:[#allocation7 + $0x8] sm:$0xff] %v51
    // Predicated region
    $region18: #{tpu_custom_call.1} parent=1 // pred_check
      _
    $region19: #{tpu_custom_call.1} parent=1 // pred_check_branch
      %55 = sbr.rel (0) target = $region21
    $region20: #{tpu_custom_call.1} parent=1 // pred_region
      %57 = vsyncadd [#allocation4], 0
      %s59 = sshll.u32 [#allocation7], 4
      %s60 = int_to_ptr.vmem [resolvable:$true] %s59
      %s61 = sshll.u32 %s2, 4
      %s62 = int_to_ptr.hbm [resolvable:$true] %s61
      %64 = dma.vmem_to_hbm [thread:$0]  %s60, 256, %s62, [#allocation4]
    $region21: #{tpu_custom_call.1} parent=1 // pred_fallthru
      _
    // Predicated region
    $region22: #{tpu_custom_call.1} parent=1 // pred_check
      _
    $region23: #{tpu_custom_call.1} parent=1 // pred_check_branch
      %66 = sbr.rel (0) target = $region25
    $region24: #{tpu_custom_call.1} parent=1 // pred_region
      %68 = dma.done [#allocation4], 256
    $region25: #{tpu_custom_call.1} parent=1 // pred_fallthru
      _
    %69 = vsyncpa [#allocation3], 1
    %70 = vsyncpa [#allocation6], 1
    %71 = vsyncpa [#allocation4], 1

</llo_original>
